<compile_context>
chip_gen: v5e
topology: v5e:2x2
jax: 0.10.0
libtpu: 0.0.40
codegen_flags: <defaults>
</compile_context>

<pallas_src>
import math
import functools

import jax
import jax.numpy as jnp
from jax.experimental import pallas as pl
from jax.experimental.pallas import tpu as pltpu

_MIB = 1024 * 1024


def _vmem_capacity_bytes():
    """Trace-time VMEM capacity query; conservative fallback if unavailable."""
    try:
        return int(pltpu.get_tpu_info().vmem_capacity_bytes)
    except Exception:
        return 64 * _MIB  # assume smallest-VMEM generation when unknown


def _chip_config():
    """Generation-aware tile caps / scoped-VMEM limit."""
    cap = _vmem_capacity_bytes()
    if cap > 64 * _MIB:  # v5e / v6e: 128 MiB VMEM -> longer KV tiles, deeper buffers
        return dict(tq_max=256, tk_max=512, vmem_limit=96 * _MIB)
    # v7x-class: 64 MiB per TC -> keep 256 tiles, leave headroom
    return dict(tq_max=256, tk_max=256, vmem_limit=48 * _MIB)


def _pick_tile(n, max_tile):
    """Largest of (512, 256, 128) <= max_tile that divides n, else full extent."""
    for t in (512, 256, 128):
        if t <= max_tile and n % t == 0:
            return t
    # TODO(synk): remainder/padding handling for long sequences that are not
    #             multiples of 128 (currently pulls the full extent into VMEM).
    return n


# ---------------------------------------------------------------------------
# Kernel 1: fused QKV projection (one x @ [Wq|Wk|Wv] matmul per row tile)
# ---------------------------------------------------------------------------
def qkv_proj_kernel(x_ref, w_ref, b_ref, q_ref, kt_ref, v_ref, *, scale):
    H = q_ref.shape[-1]
    x = x_ref[0].astype(jnp.bfloat16)                          # [tq, H] bf16
    acc = jnp.dot(x, w_ref[...],                               # bf16 MXU, f32 acc
                  preferred_element_type=jnp.float32)          # [tq, 3H]
    acc = acc + b_ref[...]                                     # f32 bias [1, 3H]
    # Fold softmax scale into Q (touched exactly once here) -> no per-KV-step
    # scale multiply in the flash inner loop.
    q_ref[0] = (acc[:, 0:H] * scale).astype(q_ref.dtype)
    # Store K pre-transposed ([H, tq] block of a [B, H, S] array): the flash
    # score matmul then contracts q dim1 with k dim0, no per-head transpose.
    kt_ref[0] = acc[:, H:2 * H].astype(kt_ref.dtype).T
    v_ref[0] = acc[:, 2 * H:3 * H].astype(v_ref.dtype)


def _qkv_projection(x, w_qkv, b_qkv, *, tq, scale, vmem_limit):
    B, S, H = x.shape
    row_spec = pl.BlockSpec((1, tq, H), lambda b, i: (b, i, 0))
    kt_spec = pl.BlockSpec((1, H, tq), lambda b, i: (b, 0, i))
    resident = pl.BlockSpec(memory_space=pltpu.MemorySpace.VMEM)  # single copy
    # TODO(synk): for very large H (>= 3072 on v7x) stream w_qkv by column
    #             blocks (extra grid axis + f32 VMEM accumulator) instead of
    #             keeping it fully resident.
    bsh = jax.ShapeDtypeStruct((B, S, H), jnp.bfloat16)
    kt_sh = jax.ShapeDtypeStruct((B, H, S), jnp.bfloat16)
    return pl.pallas_call(
        functools.partial(qkv_proj_kernel, scale=scale),
        out_shape=(bsh, kt_sh, bsh),
        grid_spec=pltpu.PrefetchScalarGridSpec(
            num_scalar_prefetch=0,
            grid=(B, S // tq),
            in_specs=[row_spec, resident, resident],
            out_specs=(row_spec, kt_spec, row_spec),
        ),
        compiler_params=pltpu.CompilerParams(
            dimension_semantics=("parallel", "parallel"),
            vmem_limit_bytes=vmem_limit),
    )(x, w_qkv, b_qkv)


# ---------------------------------------------------------------------------
# Kernel 2: flash attention (online softmax over KV tiles) + output projection
# ---------------------------------------------------------------------------
def flash_attn_kernel(q_ref, kt_ref, v_ref, mask_ref, wo_ref, bo_ref,
                      out_ref, m_ref, l_ref, acc_ref,
                      *, num_heads, head_size):
    ki = pl.program_id(2)

    @pl.when(ki == 0)
    def _init():
        # -1e30 (not -inf): safe with finite additive masks (e.g. -1e9 style).
        m_ref[...] = jnp.full(m_ref.shape, -1e30, dtype=m_ref.dtype)
        l_ref[...] = jnp.zeros(l_ref.shape, dtype=l_ref.dtype)
        acc_ref[...] = jnp.zeros(acc_ref.shape, dtype=acc_ref.dtype)

    q = q_ref[0]                                  # bf16 [tq, H] (pre-scaled)
    kt = kt_ref[0]                                # bf16 [H, tk] (pre-transposed)
    v = v_ref[0]                                  # bf16 [tk, H]
    mask = mask_ref[0, 0].astype(jnp.float32)     # [tq, tk] additive

    m_prev = m_ref[...]                           # [tq, nh] f32
    l_prev = l_ref[...]                           # [tq, nh] f32
    acc_prev = acc_ref[...]                       # [tq, H]  f32
    tq = q.shape[0]

    m_cols, l_cols, alpha_cols, pv_cols = [], [], [], []
    for h in range(num_heads):
        sl = slice(h * head_size, (h + 1) * head_size)
        q_h = q[:, sl]                            # [tq, d] bf16
        kt_h = kt[sl, :]                          # [d, tk] bf16
        v_h = v[:, sl]                            # [tk, d] bf16

        # scores tile [tq, tk]: bf16 MXU matmul, f32 accumulation, no transpose
        s = jnp.dot(q_h, kt_h, preferred_element_type=jnp.float32)
        s = s + mask                              # module: attn_weights += mask

        m_p = m_prev[:, h:h + 1]                  # [tq, 1]
        l_p = l_prev[:, h:h + 1]
        m_n = jnp.maximum(m_p, jnp.max(s, axis=-1, keepdims=True))
        alpha = jnp.exp(m_p - m_n)                # rescale of old stats
        p = jnp.exp(s - m_n)                      # [tq, tk] f32

        m_cols.append(m_n)
        l_cols.append(alpha * l_p + jnp.sum(p, axis=-1, keepdims=True))
        alpha_cols.append(jnp.broadcast_to(alpha, (tq, head_size)))
        # attn_dropout: identity in eval mode
        pv_cols.append(jnp.dot(p.astype(jnp.bfloat16), v_h,
                               preferred_element_type=jnp.float32))

    # Single lane-dense store per statistic / accumulator (no per-head masked
    # column stores in the inner loop).
    m_ref[...] = jnp.concatenate(m_cols, axis=1)               # [tq, nh]
    l_ref[...] = jnp.concatenate(l_cols, axis=1)               # [tq, nh]
    alpha_full = jnp.concatenate(alpha_cols, axis=1)           # [tq, H]
    pv_full = jnp.concatenate(pv_cols, axis=1)                 # [tq, H]
    acc_ref[...] = alpha_full * acc_prev + pv_full

    @pl.when(ki == pl.num_programs(2) - 1)
    def _finalize():
        inv_l = pl.reciprocal(l_ref[...], approx=False)        # [tq, nh]
        inv_full = jnp.concatenate(
            [jnp.broadcast_to(inv_l[:, h:h + 1], (tq, head_size))
             for h in range(num_heads)], axis=1)               # [tq, H]
        ctx = (acc_ref[...] * inv_full).astype(jnp.bfloat16)   # [tq, H]
        out = jnp.dot(ctx, wo_ref[...],
                      preferred_element_type=jnp.float32) + bo_ref[...]
        # resid_dropout: identity in eval mode
        out_ref[0] = out.astype(out_ref.dtype)


def gpt_attention(hidden_state, mask, params, *, num_heads):
    """hidden_state: [B, S, H]; mask: [B, 1, S, S] additive."""
    B, S, H = hidden_state.shape
    assert H % num_heads == 0
    head_size = H // num_heads
    wq, bq, wk, bk, wv, bv, wo, bo = params

    cfg = _chip_config()
    tq = _pick_tile(S, cfg["tq_max"])
    tk = _pick_tile(S, cfg["tk_max"])
    n_q = S // tq
    n_kv = S // tk

    # Fused QKV weights [H, 3H]; bf16 matmul operands, f32 biases.
    w_qkv = jnp.concatenate([wq, wk, wv], axis=1).astype(jnp.bfloat16)
    b_qkv = jnp.concatenate([bq, bk, bv], axis=1).astype(jnp.float32)
    wo_bf = wo.astype(jnp.bfloat16)
    bo_f32 = bo.astype(jnp.float32)
    # Additive mask as bf16: halves the per-step mask DMA stream; exact for the
    # usual 0 / -1e9 causal masks.
    mask_bf = mask.astype(jnp.bfloat16)

    q, kt, v = _qkv_projection(hidden_state, w_qkv, b_qkv, tq=tq,
                               scale=1.0 / math.sqrt(head_size),
                               vmem_limit=cfg["vmem_limit"])

    kernel = functools.partial(flash_attn_kernel,
                               num_heads=num_heads, head_size=head_size)

    resident = pl.BlockSpec(memory_space=pltpu.MemorySpace.VMEM)  # single copy
    q_spec = pl.BlockSpec((1, tq, H), lambda b, qi, ki: (b, qi, 0))
    kt_spec = pl.BlockSpec((1, H, tk), lambda b, qi, ki: (b, 0, ki))
    v_spec = pl.BlockSpec((1, tk, H), lambda b, qi, ki: (b, ki, 0))
    mask_spec = pl.BlockSpec((1, 1, tq, tk), lambda b, qi, ki: (b, 0, qi, ki))
    out_spec = pl.BlockSpec((1, tq, H), lambda b, qi, ki: (b, qi, 0))

    # TODO(synk): for v7x megacore occupancy ensure B * n_q >= 2 at deployment
    #             shapes (shrink tq or add heads as a parallel axis otherwise).
    # TODO(synk): output could be bf16 if the surrounding model runs in bf16;
    #             kept at hidden_state.dtype for parity with the PyTorch module.
    return pl.pallas_call(
        kernel,
        out_shape=jax.ShapeDtypeStruct((B, S, H), hidden_state.dtype),
        grid_spec=pltpu.PrefetchScalarGridSpec(
            num_scalar_prefetch=0,
            grid=(B, n_q, n_kv),
            in_specs=[q_spec, kt_spec, v_spec, mask_spec, resident, resident],
            out_specs=out_spec,
            scratch_shapes=[
                pltpu.VMEM((tq, num_heads), jnp.float32),   # running max m
                pltpu.VMEM((tq, num_heads), jnp.float32),   # running sum l
                pltpu.VMEM((tq, H), jnp.float32),           # context accumulator
            ]),
        compiler_params=pltpu.CompilerParams(
            dimension_semantics=("parallel", "parallel", "arbitrary"),
            vmem_limit_bytes=cfg["vmem_limit"]),
    )(q, kt, v, mask_bf, wo_bf, bo_f32)


# ---------------------------------------------------------------------------
# Reference + test
# ---------------------------------------------------------------------------
def _init_linear(key, in_dim, out_dim):
    # nn.Linear-style init; weights stored pre-transposed as [in, out].
    kw, kb = jax.random.split(key)
    bound = 1.0 / math.sqrt(in_dim)
    w = jax.random.uniform(kw, (in_dim, out_dim), jnp.float32, -bound, bound)
    b = jax.random.uniform(kb, (1, out_dim), jnp.float32, -bound, bound)
    return w, b


def _reference(hidden_state, mask, params, num_heads):
    """Pure-JAX f32 reference replicating the PyTorch forward (eval mode)."""
    wq, bq, wk, bk, wv, bv, wo, bo = params
    B, S, H = hidden_state.shape
    hs = H // num_heads
    q = (hidden_state @ wq + bq).reshape(B, S, num_heads, hs).transpose(0, 2, 1, 3)
    k = (hidden_state @ wk + bk).reshape(B, S, num_heads, hs).transpose(0, 2, 1, 3)
    v = (hidden_state @ wv + bv).reshape(B, S, num_heads, hs).transpose(0, 2, 1, 3)
    scores = jnp.einsum('bhqd,bhkd->bhqk', q, k) / math.sqrt(hs) + mask
    p = jax.nn.softmax(scores, axis=-1)
    ctx = jnp.einsum('bhqk,bhkd->bhqd', p, v).transpose(0, 2, 1, 3).reshape(B, S, H)
    return ctx @ wo + bo


if __name__ == "__main__":
    B, S, H, NUM_HEADS = 2, 8, 32, 4

    key = jax.random.PRNGKey(0)
    kx, kq, kk, kv, ko = jax.random.split(key, 5)

    hidden_state = jax.random.normal(kx, (B, S, H), jnp.float32)

    # causal additive mask, broadcast over heads: [B, 1, S, S]
    causal = jnp.tril(jnp.ones((S, S), jnp.float32))
    mask = jnp.where(causal == 1.0, 0.0, -1e9)
    mask = jnp.broadcast_to(mask[None, None, :, :], (B, 1, S, S))

    wq, bq = _init_linear(kq, H, H)
    wk, bk = _init_linear(kk, H, H)
    wv, bv = _init_linear(kv, H, H)
    wo, bo = _init_linear(ko, H, H)
    params = (wq, bq, wk, bk, wv, bv, wo, bo)

    out = gpt_attention(hidden_state, mask, params, num_heads=NUM_HEADS)
    out = jax.block_until_ready(out)

    ref = _reference(hidden_state, mask, params, NUM_HEADS)
    assert out.shape == (B, S, H)
    # bf16 MXU operands -> compare at bf16-level tolerance
    assert jnp.allclose(out, ref, atol=3e-2, rtol=3e-2), "mismatch vs reference"

    print("KERNEL_OK")
</pallas_src>

<mosaic_0001>
module attributes {stable_mosaic.version = 11 : i64} {
  func.func @qkv_proj_kernel(%arg0: i32, %arg1: i32, %arg2: memref<1x8x32xf32, #tpu.memory_space<vmem>>, %arg3: memref<32x96xbf16, #tpu.memory_space<vmem>>, %arg4: memref<1x96xf32, #tpu.memory_space<vmem>>, %arg5: memref<1x8x32xbf16, #tpu.memory_space<vmem>>, %arg6: memref<1x32x8xbf16, #tpu.memory_space<vmem>>, %arg7: memref<1x8x32xbf16, #tpu.memory_space<vmem>>) attributes {dimension_semantics = [#tpu.dimension_semantics<parallel>, #tpu.dimension_semantics<parallel>], iteration_bounds = array<i64: 2, 1>, scalar_prefetch = 0 : i64, scratch_operands = 0 : i64, tpu.core_type = #tpu.core_type<tc>, window_params = [{transform_indices = @transform_0, window_bounds = array<i64: 1, 8, 32>}, {pipeline_mode = #tpu.pipeline_mode<synchronous>, transform_indices = @transform_1, window_bounds = array<i64: 32, 96>}, {pipeline_mode = #tpu.pipeline_mode<synchronous>, transform_indices = @transform_2, window_bounds = array<i64: 1, 96>}, {transform_indices = @transform_3, window_bounds = array<i64: 1, 8, 32>}, {transform_indices = @transform_4, window_bounds = array<i64: 1, 32, 8>}, {transform_indices = @transform_5, window_bounds = array<i64: 1, 8, 32>}]} {
    %c0 = arith.constant 0 : index
    %c0_0 = arith.constant 0 : index
    %c0_1 = arith.constant 0 : index
    %0 = vector.load %arg2[%c0, %c0_0, %c0_1] : memref<1x8x32xf32, #tpu.memory_space<vmem>>, vector<1x8x32xf32>
    %1 = vector.shape_cast %0 : vector<1x8x32xf32> to vector<8x32xf32>
    %2 = arith.truncf %1 : vector<8x32xf32> to vector<8x32xbf16>
    %c0_2 = arith.constant 0 : index
    %c0_3 = arith.constant 0 : index
    %3 = vector.load %arg3[%c0_2, %c0_3] : memref<32x96xbf16, #tpu.memory_space<vmem>>, vector<32x96xbf16>
    %cst = arith.constant dense<0.000000e+00> : vector<8x96xf32>
    %4 = tpu.matmul %2, %3, %cst {dimension_numbers = #tpu.dot_dimension_numbers<[1], [0], [0], [1], [0, 0, 1, 1], [], []>} : vector<8x32xbf16>, vector<32x96xbf16>, vector<8x96xf32> -> vector<8x96xf32>
    %c0_4 = arith.constant 0 : index
    %c0_5 = arith.constant 0 : index
    %5 = vector.load %arg4[%c0_4, %c0_5] : memref<1x96xf32, #tpu.memory_space<vmem>>, vector<1x96xf32>
    %6 = vector.broadcast %5 : vector<1x96xf32> to vector<8x96xf32>
    %7 = arith.addf %4, %6 : vector<8x96xf32>
    %8 = vector.extract_strided_slice %7 {offsets = [0, 0], sizes = [8, 32], strides = [1, 1]} : vector<8x96xf32> to vector<8x32xf32>
    %cst_6 = arith.constant 0.353553385 : f32
    %9 = vector.broadcast %cst_6 : f32 to vector<8x32xf32>
    %10 = arith.mulf %8, %9 : vector<8x32xf32>
    %11 = arith.truncf %10 : vector<8x32xf32> to vector<8x32xbf16>
    %c0_7 = arith.constant 0 : index
    %c0_8 = arith.constant 0 : index
    %c0_9 = arith.constant 0 : index
    %12 = vector.load %arg5[%c0_7, %c0_8, %c0_9] : memref<1x8x32xbf16, #tpu.memory_space<vmem>>, vector<1x8x32xbf16>
    %13 = vector.shape_cast %12 : vector<1x8x32xbf16> to vector<8x32xbf16>
    %14 = vector.shape_cast %11 : vector<8x32xbf16> to vector<1x8x32xbf16>
    tpu.vector_store %arg5[%c0_7, %c0_8, %c0_9], %14 {strides = array<i32>} : memref<1x8x32xbf16, #tpu.memory_space<vmem>>, vector<1x8x32xbf16>,
    %15 = vector.extract_strided_slice %7 {offsets = [0, 32], sizes = [8, 32], strides = [1, 1]} : vector<8x96xf32> to vector<8x32xf32>
    %16 = arith.truncf %15 : vector<8x32xf32> to vector<8x32xbf16>
    %17 = tpu.transpose %16, [1, 0] : vector<8x32xbf16> -> vector<32x8xbf16>
    %c0_10 = arith.constant 0 : index
    %c0_11 = arith.constant 0 : index
    %c0_12 = arith.constant 0 : index
    %18 = vector.load %arg6[%c0_10, %c0_11, %c0_12] : memref<1x32x8xbf16, #tpu.memory_space<vmem>>, vector<1x32x8xbf16>
    %19 = vector.shape_cast %18 : vector<1x32x8xbf16> to vector<32x8xbf16>
    %20 = vector.shape_cast %17 : vector<32x8xbf16> to vector<1x32x8xbf16>
    tpu.vector_store %arg6[%c0_10, %c0_11, %c0_12], %20 {strides = array<i32>} : memref<1x32x8xbf16, #tpu.memory_space<vmem>>, vector<1x32x8xbf16>,
    %21 = vector.extract_strided_slice %7 {offsets = [0, 64], sizes = [8, 32], strides = [1, 1]} : vector<8x96xf32> to vector<8x32xf32>
    %22 = arith.truncf %21 : vector<8x32xf32> to vector<8x32xbf16>
    %c0_13 = arith.constant 0 : index
    %c0_14 = arith.constant 0 : index
    %c0_15 = arith.constant 0 : index
    %23 = vector.load %arg7[%c0_13, %c0_14, %c0_15] : memref<1x8x32xbf16, #tpu.memory_space<vmem>>, vector<1x8x32xbf16>
    %24 = vector.shape_cast %23 : vector<1x8x32xbf16> to vector<8x32xbf16>
    %25 = vector.shape_cast %22 : vector<8x32xbf16> to vector<1x8x32xbf16>
    tpu.vector_store %arg7[%c0_13, %c0_14, %c0_15], %25 {strides = array<i32>} : memref<1x8x32xbf16, #tpu.memory_space<vmem>>, vector<1x8x32xbf16>,
    return
  }
  func.func @transform_0(%arg0: i32, %arg1: i32) -> (i32, i32, i32) {
    %c0_i32 = arith.constant 0 : i32
    %c0_i32_0 = arith.constant 0 : i32
    return %arg0, %arg1, %c0_i32 : i32, i32, i32
  }
  func.func @transform_1(%arg0: i32, %arg1: i32) -> (i32, i32) {
    %c0_i32 = arith.constant 0 : i32
    %c0_i32_0 = arith.constant 0 : i32
    %c0_i32_1 = arith.constant 0 : i32
    return %c0_i32, %c0_i32_0 : i32, i32
  }
  func.func @transform_2(%arg0: i32, %arg1: i32) -> (i32, i32) {
    %c0_i32 = arith.constant 0 : i32
    %c0_i32_0 = arith.constant 0 : i32
    %c0_i32_1 = arith.constant 0 : i32
    return %c0_i32, %c0_i32_0 : i32, i32
  }
  func.func @transform_3(%arg0: i32, %arg1: i32) -> (i32, i32, i32) {
    %c0_i32 = arith.constant 0 : i32
    %c0_i32_0 = arith.constant 0 : i32
    return %arg0, %arg1, %c0_i32 : i32, i32, i32
  }
  func.func @transform_4(%arg0: i32, %arg1: i32) -> (i32, i32, i32) {
    %c0_i32 = arith.constant 0 : i32
    %c0_i32_0 = arith.constant 0 : i32
    return %arg0, %c0_i32, %arg1 : i32, i32, i32
  }
  func.func @transform_5(%arg0: i32, %arg1: i32) -> (i32, i32, i32) {
    %c0_i32 = arith.constant 0 : i32
    %c0_i32_0 = arith.constant 0 : i32
    return %arg0, %arg1, %c0_i32 : i32, i32, i32
  }
}

</mosaic_0001>

<llo_original>
// kernel: tpu_custom_call.1
$region0: #{tpu_custom_call.1}
  #allocation0 [shape = 'u32[]', space=smem, size = 0x4, offset = 0x4, fixed_abs, tag = 'smem constant byte address 0x4 - core index']
  #allocation1 [shape = 'u32[72,128]{1,0:T(1,128)}', space=vmem, size = 0x9000, scoped, tag = 'internal scratch']
  %s0 = inlined_call_operand.hbm [shape: f32[2,8,32], index: 0, kind: input, shape index: {}]
  %s1 = inlined_call_operand.hbm [shape: bf16[32,96], index: 1, kind: input, shape index: {}]
  %s2 = inlined_call_operand.vmem [shape: f32[1,96], index: 2, kind: input, shape index: {}]
  %s3 = inlined_call_operand.hbm [shape: bf16[2,8,32], index: 3, kind: output, shape index: {0}]
  %s4 = inlined_call_operand.vmem [shape: bf16[2,32,8], index: 4, kind: output, shape index: {1}]
  %s5 = inlined_call_operand.hbm [shape: bf16[2,8,32], index: 5, kind: output, shape index: {2}]
  %6 = xla_tuple %s3, %s4, %s5
  %s7 = sld [smem:[#allocation0]]
  $region69: #{tpu_custom_call.1} parent=0
    _
  %s9 = ssub.s32 1, %s7
  %s10 = scalar_select 0, %s9, %s7
  $region1: #{tpu_custom_call.1} parent=0
    #allocation2 [shape = 'u8[8192]{0}', space=vmem, size = 0x2000, scoped, tag = 'input window, operand 0']
    #allocation3 [shape = 's32[2]{0}', space=sflag, size = 0x8, scoped, tag = 'scoped memory for tpu_custom_call.1']
    #allocation4 [shape = 's32[2]{0}', space=sflag, size = 0x8, scoped, tag = 'scoped memory for tpu_custom_call.1']
    #allocation5 [shape = 'u8[8192]{0}', space=vmem, size = 0x2000, scoped, tag = 'input window, operand 1, single buffered']
    #allocation6 [shape = 's32[1]{0}', space=sflag, size = 0x4, scoped, tag = 'scoped memory for tpu_custom_call.1']
    #allocation7 [shape = 'u8[4096]{0}', space=vmem, size = 0x1000, scoped, tag = 'output window, operand 0']
    #allocation8 [shape = 'u8[4096]{0}', space=vmem, size = 0x1000, scoped, tag = 'output window, operand 2']
    #allocation9 [shape = 's32[2]{0}', space=sflag, size = 0x8, scoped, tag = 'scoped memory for tpu_custom_call.1']
    %11 = vsyncpa [#allocation3], 0
    %s12 = scalar_lea.sflag [#allocation3], 1
    %13 = vsyncpa %s12, 0
    %14 = vsyncpa [#allocation6], 0
    %15 = vsyncpa [#allocation4], 0
    %s16 = scalar_lea.sflag [#allocation4], 1
    %17 = vsyncpa %s16, 0
    %18 = vsyncpa [#allocation9], 0
    %s19 = scalar_lea.sflag [#allocation9], 1
    %20 = vsyncpa %s19, 0
    loop: start=0, step=1, limit=4
    $region2: #{tpu_custom_call.1} parent=1 // loop_pre_header
      _
    $region3: #{tpu_custom_call.1} parent=1 // loop_header
      %s22 = sphi 0, %s26
      %p23 = scmp.ge.s32.totalorder %s22, 4
      %s29 = sphi 0, %s41
      %s30 = sphi 0, %s37
      %s31 = sphi 0, %s29
      %s32 = sphi 0, %s30
      %s33 = sphi 0, %s31
      %s34 = sphi 0, %s32
      %s46 = sphi 0, %s48
      %s49 = sphi 0, %s46
      %s50 = sphi 0, %s49
      %s66 = sphi 0, %s50
      %s70 = sphi 0, %s70
      %s72 = sphi 0, %s70
      %s73 = sphi 0, %s72
      %s87 = sphi 0, %s73
      %s91 = sphi 0, %s91
      %s93 = sphi 0, %s91
      %s94 = sphi 0, %s93
      %s108 = sphi 0, %s94
      %s116 = sphi 0, %s118
      %s119 = sphi 0, %s116
      %s120 = sphi 0, %s119
      %s136 = sphi 0, %s120
      %s144 = sphi 0, %s146
      %s147 = sphi 0, %s144
      %s148 = sphi 0, %s147
      %s164 = sphi 0, %s148
      %s172 = sphi 0, %s174
      %s175 = sphi 0, %s172
      %s176 = sphi 0, %s175
      %s192 = sphi 0, %s176
    $region4: #{tpu_custom_call.1} parent=1 // loop_header_branch
      %25 = sbr.rel (%p23) target = $region8
    $region5: #{tpu_custom_call.1} parent=1 // loop_body
      %s27 = ssub.s32 %s22, 1
      %s28 = ssub.s32 %s22, 2
      %s35 = sadd.s32 1, %s30
      %p36 = scmp.ge.s32.totalorder %s35, 1
      %s37 = scalar_select %p36, 0, %s35
      %s38 = sadd.s32 1, %s29
      %s39 = scalar_select %p36, %s38, %s29
      %p40 = scmp.ge.s32.totalorder %s39, 2
      %s41 = scalar_select %p40, 0, %s39
      %s42 = ssub.s32 %s29, %s41
      %s43 = ssub.s32 %s30, %s37
      %s44 = sor.u32 %s42, %s43
      %p45 = scmp.eq.s32.totalorder %s44, 0
      %s47 = sadd.s32 %s46, 1
      %s48 = scalar_select %p45, %s46, %s47
      %p51 = pneg %p45
      %p52 = scmp.eq.s32.totalorder %s22, 1
      %p53 = por %p51, %p52
      %p54 = scmp.ne.s32.totalorder %s46, %s49
      %p55 = scmp.eq.s32.totalorder %s22, 0
      %p56 = por %p54, %p55
      %p57 = scmp.ne.s32.totalorder %s46, %s49
      %p58 = scmp.eq.s32.totalorder %s27, 1
      %p59 = por %p57, %p58
      %p60 = scmp.ne.s32.totalorder %s49, %s50
      %p61 = scmp.eq.s32.totalorder %s27, 0
      %p62 = por %p60, %p61
      %p63 = scmp.ne.s32.totalorder %s49, %s50
      %p64 = scmp.eq.s32.totalorder %s28, 1
      %p65 = por %p63, %p64
      %p67 = scmp.ne.s32.totalorder %s50, %s66
      %p68 = scmp.eq.s32.totalorder %s28, 0
      %p69 = por %p67, %p68
      %s71 = sadd.s32 %s70, 1
      %p74 = scmp.eq.s32.totalorder %s22, 1
      %p75 = scmp.ne.s32.totalorder %s70, %s72
      %p76 = scmp.eq.s32.totalorder %s22, 0
      %p77 = por %p75, %p76
      %p78 = scmp.ne.s32.totalorder %s70, %s72
      %p79 = scmp.eq.s32.totalorder %s27, 1
      %p80 = por %p78, %p79
      %p81 = scmp.ne.s32.totalorder %s72, %s73
      %p82 = scmp.eq.s32.totalorder %s27, 0
      %p83 = por %p81, %p82
      %p84 = scmp.ne.s32.totalorder %s72, %s73
      %p85 = scmp.eq.s32.totalorder %s28, 1
      %p86 = por %p84, %p85
      %p88 = scmp.ne.s32.totalorder %s73, %s87
      %p89 = scmp.eq.s32.totalorder %s28, 0
      %p90 = por %p88, %p89
      %s92 = sadd.s32 %s91, 1
      %p95 = scmp.eq.s32.totalorder %s22, 1
      %p96 = scmp.ne.s32.totalorder %s91, %s93
      %p97 = scmp.eq.s32.totalorder %s22, 0
      %p98 = por %p96, %p97
      %p99 = scmp.ne.s32.totalorder %s91, %s93
      %p100 = scmp.eq.s32.totalorder %s27, 1
      %p101 = por %p99, %p100
      %p102 = scmp.ne.s32.totalorder %s93, %s94
      %p103 = scmp.eq.s32.totalorder %s27, 0
      %p104 = por %p102, %p103
      %p105 = scmp.ne.s32.totalorder %s93, %s94
      %p106 = scmp.eq.s32.totalorder %s28, 1
      %p107 = por %p105, %p106
      %p109 = scmp.ne.s32.totalorder %s94, %s108
      %p110 = scmp.eq.s32.totalorder %s28, 0
      %p111 = por %p109, %p110
      %s112 = ssub.s32 %s29, %s41
      %s113 = ssub.s32 %s30, %s37
      %s114 = sor.u32 %s112, %s113
      %p115 = scmp.eq.s32.totalorder %s114, 0
      %s117 = sadd.s32 %s116, 1
      %s118 = scalar_select %p115, %s116, %s117
      %p121 = pneg %p115
      %p122 = scmp.eq.s32.totalorder %s22, 1
      %p123 = por %p121, %p122
      %p124 = scmp.ne.s32.totalorder %s116, %s119
      %p125 = scmp.eq.s32.totalorder %s22, 0
      %p126 = por %p124, %p125
      %p127 = scmp.ne.s32.totalorder %s116, %s119
      %p128 = scmp.eq.s32.totalorder %s27, 1
      %p129 = por %p127, %p128
      %p130 = scmp.ne.s32.totalorder %s119, %s120
      %p131 = scmp.eq.s32.totalorder %s27, 0
      %p132 = por %p130, %p131
      %p133 = scmp.ne.s32.totalorder %s119, %s120
      %p134 = scmp.eq.s32.totalorder %s28, 1
      %p135 = por %p133, %p134
      %p137 = scmp.ne.s32.totalorder %s120, %s136
      %p138 = scmp.eq.s32.totalorder %s28, 0
      %p139 = por %p137, %p138
      %s140 = ssub.s32 %s29, %s41
      %s141 = ssub.s32 %s30, %s37
      %s142 = sor.u32 %s140, %s141
      %p143 = scmp.eq.s32.totalorder %s142, 0
      %s145 = sadd.s32 %s144, 1
      %s146 = scalar_select %p143, %s144, %s145
      %p149 = pneg %p143
      %p150 = scmp.eq.s32.totalorder %s22, 1
      %p151 = por %p149, %p150
      %p152 = scmp.ne.s32.totalorder %s144, %s147
      %p153 = scmp.eq.s32.totalorder %s22, 0
      %p154 = por %p152, %p153
      %p155 = scmp.ne.s32.totalorder %s144, %s147
      %p156 = scmp.eq.s32.totalorder %s27, 1
      %p157 = por %p155, %p156
      %p158 = scmp.ne.s32.totalorder %s147, %s148
      %p159 = scmp.eq.s32.totalorder %s27, 0
      %p160 = por %p158, %p159
      %p161 = scmp.ne.s32.totalorder %s147, %s148
      %p162 = scmp.eq.s32.totalorder %s28, 1
      %p163 = por %p161, %p162
      %p165 = scmp.ne.s32.totalorder %s148, %s164
      %p166 = scmp.eq.s32.totalorder %s28, 0
      %p167 = por %p165, %p166
      %s168 = ssub.s32 %s29, %s41
      %s169 = ssub.s32 %s30, %s37
      %s170 = sor.u32 %s168, %s169
      %p171 = scmp.eq.s32.totalorder %s170, 0
      %s173 = sadd.s32 %s172, 1
      %s174 = scalar_select %p171, %s172, %s173
      %p177 = pneg %p171
      %p178 = scmp.eq.s32.totalorder %s22, 1
      %p179 = por %p177, %p178
      %p180 = scmp.ne.s32.totalorder %s172, %s175
      %p181 = scmp.eq.s32.totalorder %s22, 0
      %p182 = por %p180, %p181
      %p183 = scmp.ne.s32.totalorder %s172, %s175
      %p184 = scmp.eq.s32.totalorder %s27, 1
      %p185 = por %p183, %p184
      %p186 = scmp.ne.s32.totalorder %s175, %s176
      %p187 = scmp.eq.s32.totalorder %s27, 0
      %p188 = por %p186, %p187
      %p189 = scmp.ne.s32.totalorder %s175, %s176
      %p190 = scmp.eq.s32.totalorder %s28, 1
      %p191 = por %p189, %p190
      %p193 = scmp.ne.s32.totalorder %s176, %s192
      %p194 = scmp.eq.s32.totalorder %s28, 0
      %p195 = por %p193, %p194
      %p196 = scmp.le.s32.totalorder 1, %s22
      %p197 = scmp.lt.s32.totalorder %s22, 3
      %p198 = pnand %p196, %p197
      %p199 = pneg %p198
      // Predicated region
      $region9: #{tpu_custom_call.1} parent=5 // pred_check
        _
      $region10: #{tpu_custom_call.1} parent=5 // pred_check_branch
        %201 = sbr.rel (%p198) target = $region12
      $region11: #{tpu_custom_call.1} parent=5 // pred_region
        %s202 = ssub.s32 %s22, 1
        // Predicated region
        $region13: #{tpu_custom_call.1} parent=11 // pred_check
          %p203 = pneg %p83
        $region14: #{tpu_custom_call.1} parent=11 // pred_check_branch
          %205 = sbr.rel (%p203) target = $region16
        $region15: #{tpu_custom_call.1} parent=11 // pred_region
          %207 = vsyncadd [#allocation6], 0
          %s208 = sshll.u32 %s1, 4
          %s209 = int_to_ptr.hbm [resolvable:$true] %s208
          %s210 = sshll.u32 [#allocation5], 4
          %s211 = int_to_ptr.vmem [resolvable:$true] %s210
          %216 = dma.hbm_to_vmem [thread:$0]  %s209, 256, %s211, [#allocation6], 64, 64, 4
        $region16: #{tpu_custom_call.1} parent=11 // pred_fallthru
          _
        // Predicated region
        $region17: #{tpu_custom_call.1} parent=11 // pred_check
          %p217 = pneg %p104
        $region18: #{tpu_custom_call.1} parent=11 // pred_check_branch
          %219 = sbr.rel (%p217) target = $region20
        $region19: #{tpu_custom_call.1} parent=11 // pred_region
          _
        $region20: #{tpu_custom_call.1} parent=11 // pred_fallthru
          _
      $region12: #{tpu_custom_call.1} parent=5 // pred_fallthru
        _
      %p220 = scmp.lt.s32.totalorder %s22, 2
      // Predicated region
      $region21: #{tpu_custom_call.1} parent=5 // pred_check
        %p221 = pneg %p220
      $region22: #{tpu_custom_call.1} parent=5 // pred_check_branch
        %223 = sbr.rel (%p221) target = $region24
      $region23: #{tpu_custom_call.1} parent=5 // pred_region
        // Predicated region
        $region25: #{tpu_custom_call.1} parent=23 // pred_check
          %p224 = pneg %p56
        $region26: #{tpu_custom_call.1} parent=23 // pred_check_branch
          %226 = sbr.rel (%p224) target = $region28
        $region27: #{tpu_custom_call.1} parent=23 // pred_region
          %s227 = sand.u32 %s46, 1
          %s228 = scalar_lea.sflag [#allocation3], %s227
          %s229 = sand.u32 %s46, 1
          %s230 = smul.addr %s229, 8
          %s231 = scalar_lea.vmem [#allocation2], %s230
          %233 = vsyncadd %s228, 0
          %s234 = sadd.s32 %s30, %s29
          %s235 = smul.addr %s234, 8
          %s236 = scalar_lea.hbm %s0, %s235
          %s238 = sshll.u32 %s236, 4
          %s239 = int_to_ptr.hbm [resolvable:$true] %s238
          %s240 = sshll.u32 %s231, 4
          %s241 = int_to_ptr.vmem [resolvable:$true] %s240
          %243 = dma.hbm_to_vmem [thread:$0]  %s239, 128, %s241, %s228
        $region28: #{tpu_custom_call.1} parent=23 // pred_fallthru
          _
      $region24: #{tpu_custom_call.1} parent=5 // pred_fallthru
        _
      %p244 = scmp.le.s32.totalorder 1, %s22
      %p245 = scmp.lt.s32.totalorder %s22, 3
      %p246 = pnand %p244, %p245
      %p247 = pneg %p246
      // Predicated region
      $region29: #{tpu_custom_call.1} parent=5 // pred_check
        _
      $region30: #{tpu_custom_call.1} parent=5 // pred_check_branch
        %249 = sbr.rel (%p246) target = $region32
      $region31: #{tpu_custom_call.1} parent=5 // pred_region
        %s250 = ssub.s32 %s22, 1
        %s251 = sand.u32 %s49, 1
        %s252 = scalar_lea.sflag [#allocation3], %s251
        %s253 = sand.u32 %s49, 1
        %s254 = smul.addr %s253, 8
        %s255 = scalar_lea.vmem [#allocation2], %s254
        // Predicated region
        $region33: #{tpu_custom_call.1} parent=31 // pred_check
          %p256 = pneg %p62
        $region34: #{tpu_custom_call.1} parent=31 // pred_check_branch
          %258 = sbr.rel (%p256) target = $region36
        $region35: #{tpu_custom_call.1} parent=31 // pred_region
          %260 = dma.done %s252, 128
        $region36: #{tpu_custom_call.1} parent=31 // pred_fallthru
          _
        // Predicated region
        $region37: #{tpu_custom_call.1} parent=31 // pred_check
          %p261 = pneg %p83
        $region38: #{tpu_custom_call.1} parent=31 // pred_check_branch
          %263 = sbr.rel (%p261) target = $region40
        $region39: #{tpu_custom_call.1} parent=31 // pred_region
          %265 = dma.done [#allocation6], 256
        $region40: #{tpu_custom_call.1} parent=31 // pred_fallthru
          _
        %s266 = sand.u32 %s49, 1
        %s267 = scalar_lea.sflag [#allocation3], %s266
        %s268 = sand.u32 %s49, 1
        %s269 = smul.addr %s268, 8
        %s270 = scalar_lea.vmem [#allocation2], %s269
        %p271 = pneg %p62
        %p272 = pneg %p59
        %p273 = pneg %p83
        %p274 = pneg %p80
        %p275 = pneg %p104
        %p276 = pneg %p101
        %p277 = pneg %p132
        %p278 = pneg %p129
        %s279 = sand.u32 %s119, 1
        %s280 = scalar_lea.sflag [#allocation4], %s279
        %s281 = sand.u32 %s119, 1
        %s282 = smul.addr %s281, 4
        %s283 = scalar_lea.vmem [#allocation7], %s282
        %p284 = pneg %p160
        %p285 = pneg %p157
        %p286 = scmp.lt.s32.totalorder %s31, 1
        %s287 = scalar_select %p286, %s31, 1
        %p288 = scmp.lt.s32.totalorder %s32, 0
        %s289 = scalar_select %p288, %s32, 0
        %s290 = smul.addr %s287, 4
        %s291 = sadd.s32 %s289, %s290
        %s292 = smul.addr %s291, 4
        %s293 = scalar_lea.vmem %s4, %s292
        %p294 = pneg %p188
        %p295 = pneg %p185
        %s296 = sand.u32 %s175, 1
        %s297 = scalar_lea.sflag [#allocation9], %s296
        %s298 = sand.u32 %s175, 1
        %s299 = smul.addr %s298, 4
        %s300 = scalar_lea.vmem [#allocation8], %s299
        %p301 = scmp.lt.s32.totalorder %s31, 1
        %s302 = scalar_select %p301, %s31, 1
        %p303 = scmp.lt.s32.totalorder %s32, 0
        %s304 = scalar_select %p303, %s32, 0
        %s305 = smul.addr %s302, 4
        %s306 = sadd.s32 %s304, %s305
        %s307 = smul.addr %s306, 4
        %s308 = scalar_lea.vmem %s4, %s307
        %v310 = vld [vmem:[%s255] sm:$0xff]
        %v311 = vpack.c.bf16 %v310, %v310
        %v312 = vld [vmem:[#allocation5] sm:$0xf]
        %v313 = vld [vmem:[#allocation5 + $0x4] sm:$0xf]
        %v314 = vld [vmem:[#allocation5 + $0x8] sm:$0xf]
        %v315 = vld [vmem:[#allocation5 + $0xc] sm:$0xf]
        %v316 = vld [vmem:[%s2] sm:$0x1]
        %v318 = vperm.slane %v316, 0
        %v324 = vunpack.c.l.b16 %v312
        %v325 = vunpack.c.l.b16 %v313
        %v326 = vunpack.c.l.b16 %v314
        %v327 = vunpack.c.l.b16 %v315
        %v328 = vpack.c.b16 %v325, %v324
        %v329 = vpack.c.b16 %v327, %v326
        %vm332 = vcmask 261120
        %v334 = vsel %vm332, %v311, 0
        %336 = vmatpush.bf16.msra.mxu0 0
        %337 = vmatpush.bf16.msra.mxu0 0
        %338 = vmatpush.bf16.msra.mxu0 0
        %339 = vmatpush.bf16.msra.mxu0 0
        %340 = vmatpush.bf16.msra.mxu0 0
        %341 = vmatpush.bf16.msra.mxu0 0
        %342 = vmatpush.bf16.msra.mxu0 %v329
        %343 = vmatpush.bf16.msra.mxu0 %v328
        %344 = vmatmul.bf16.gmra.mxu0 %v334
        %v345 = vpop.f32.mrf.mxu0
        %v346 = vadd.f32 %v318, %v345
        %v347 = vpop.f32.mrf.mxu0
        %348 = vdwg.mxu0
        %v349 = vmul.f32 %v346, 0.35355338
        %v350 = vpack.c.bf16 %v349, %v349
        %vm351 = vcmask 257024
        %352 = vst.msk [vmem:[%s283] sm:$0xf] %vm351, %v350
        %v353 = vpack.c.bf16 %v346, %v346
        %355 = vrot.lane.b32.xlu0 %v353, 96
        %v356 = vpop.permute.xlu0 %355
        %358 = vxpose.xlu0.c.b16.start [1/8] %v356, 128
        %359 = vxpose.xlu0.c.b16.cont [2/8] 0, 128
        %360 = vxpose.xlu0.c.b16.cont [3/8] 0, 128
        %361 = vxpose.xlu0.c.b16.cont [4/8] 0, 128
        %362 = vxpose.xlu0.c.b16.cont [5/8] 0, 128
        %363 = vxpose.xlu0.c.b16.cont [6/8] 0, 128
        %364 = vxpose.xlu0.c.b16.cont [7/8] 0, 128
        %365 = vxpose.xlu0.c.b16.end [8/8] 0, 128
        %v366 = vpop.trf.xlu0
        %v367 = vpop.trf.xlu0
        %v368 = vpop.trf.xlu0
        %v369 = vpop.trf.xlu0
        %v370 = vpop.trf.xlu0
        %v371 = vpop.trf.xlu0
        %v372 = vpop.trf.xlu0
        %v373 = vpop.trf.xlu0
        %v376 = vunpack.c.l.b16 %v366
        %v377 = vunpack.c.h.b16 %v366
        %v378 = vunpack.c.l.b16 %v367
        %v379 = vunpack.c.h.b16 %v367
        %v380 = vpack.c.b16 %v376, %v376
        %v381 = vpack.c.b16 %v377, %v377
        %v382 = vpack.c.b16 %v378, %v378
        %v383 = vpack.c.b16 %v379, %v379
        %vm388 = vcmask 60416
        %389 = vst.msk [vmem:[%s308] sm:$0xf] %vm388, %v380
        %390 = vst.msk [vmem:[%s308 + $0x4] sm:$0xf] %vm388, %v381
        %391 = vst.msk [vmem:[%s308 + $0x8] sm:$0xf] %vm388, %v382
        %392 = vst.msk [vmem:[%s308 + $0xc] sm:$0xf] %vm388, %v383
        %393 = vrot.lane.b32.xlu0 %v353, 64
        %v394 = vpop.permute.xlu0 %393
        %396 = vst.msk [vmem:[%s300] sm:$0xf] %vm351, %v394
        %s397 = sand.u32 %s119, 1
        %s398 = scalar_lea.sflag [#allocation4], %s397
        %s399 = sand.u32 %s119, 1
        %s400 = smul.addr %s399, 4
        %s401 = scalar_lea.vmem [#allocation7], %s400
        %p402 = scmp.lt.s32.totalorder %s31, 1
        %s403 = scalar_select %p402, %s31, 1
        %p404 = scmp.lt.s32.totalorder %s32, 0
        %s405 = scalar_select %p404, %s32, 0
        %s406 = smul.addr %s403, 4
        %s407 = sadd.s32 %s405, %s406
        %s408 = smul.addr %s407, 4
        %s409 = scalar_lea.vmem %s4, %s408
        %s410 = sand.u32 %s175, 1
        %s411 = scalar_lea.sflag [#allocation9], %s410
        %s412 = sand.u32 %s175, 1
        %s413 = smul.addr %s412, 4
        %s414 = scalar_lea.vmem [#allocation8], %s413
        // Predicated region
        $region41: #{tpu_custom_call.1} parent=31 // pred_check
          %p415 = pneg %p129
        $region42: #{tpu_custom_call.1} parent=31 // pred_check_branch
          %417 = sbr.rel (%p415) target = $region44
        $region43: #{tpu_custom_call.1} parent=31 // pred_region
          %419 = vsyncadd %s398, 0
          %s420 = sadd.s32 %s32, %s31
          %s421 = smul.addr %s420, 4
          %s422 = scalar_lea.hbm %s3, %s421
          %s424 = sshll.u32 %s401, 4
          %s425 = int_to_ptr.vmem [resolvable:$true] %s424
          %s426 = sshll.u32 %s422, 4
          %s427 = int_to_ptr.hbm [resolvable:$true] %s426
          %429 = dma.vmem_to_hbm [thread:$0]  %s425, 64, %s427, %s398
        $region44: #{tpu_custom_call.1} parent=31 // pred_fallthru
          _
        // Predicated region
        $region45: #{tpu_custom_call.1} parent=31 // pred_check
          %p430 = pneg %p157
        $region46: #{tpu_custom_call.1} parent=31 // pred_check_branch
          %432 = sbr.rel (%p430) target = $region48
        $region47: #{tpu_custom_call.1} parent=31 // pred_region
          _
        $region48: #{tpu_custom_call.1} parent=31 // pred_fallthru
          _
        // Predicated region
        $region49: #{tpu_custom_call.1} parent=31 // pred_check
          %p433 = pneg %p185
        $region50: #{tpu_custom_call.1} parent=31 // pred_check_branch
          %435 = sbr.rel (%p433) target = $region52
        $region51: #{tpu_custom_call.1} parent=31 // pred_region
          %437 = vsyncadd %s411, 0
          %s438 = sadd.s32 %s32, %s31
          %s439 = smul.addr %s438, 4
          %s440 = scalar_lea.hbm %s5, %s439
          %s442 = sshll.u32 %s414, 4
          %s443 = int_to_ptr.vmem [resolvable:$true] %s442
          %s444 = sshll.u32 %s440, 4
          %s445 = int_to_ptr.hbm [resolvable:$true] %s444
          %447 = dma.vmem_to_hbm [thread:$0]  %s443, 64, %s445, %s411
        $region52: #{tpu_custom_call.1} parent=31 // pred_fallthru
          _
      $region32: #{tpu_custom_call.1} parent=5 // pred_fallthru
        _
      %p448 = scmp.le.s32.totalorder 2, %s22
      // Predicated region
      $region53: #{tpu_custom_call.1} parent=5 // pred_check
        %p449 = pneg %p448
      $region54: #{tpu_custom_call.1} parent=5 // pred_check_branch
        %451 = sbr.rel (%p449) target = $region56
      $region55: #{tpu_custom_call.1} parent=5 // pred_region
        %s452 = ssub.s32 %s22, 2
        // Predicated region
        $region57: #{tpu_custom_call.1} parent=55 // pred_check
          %p453 = pneg %p135
        $region58: #{tpu_custom_call.1} parent=55 // pred_check_branch
          %455 = sbr.rel (%p453) target = $region60
        $region59: #{tpu_custom_call.1} parent=55 // pred_region
          %s456 = sand.u32 %s120, 1
          %s457 = scalar_lea.sflag [#allocation4], %s456
          %s458 = sand.u32 %s120, 1
          %s459 = smul.addr %s458, 4
          %s460 = scalar_lea.vmem [#allocation7], %s459
          %462 = dma.done %s457, 64
        $region60: #{tpu_custom_call.1} parent=55 // pred_fallthru
          _
        // Predicated region
        $region61: #{tpu_custom_call.1} parent=55 // pred_check
          %p463 = pneg %p163
        $region62: #{tpu_custom_call.1} parent=55 // pred_check_branch
          %465 = sbr.rel (%p463) target = $region64
        $region63: #{tpu_custom_call.1} parent=55 // pred_region
          %p466 = scmp.lt.s32.totalorder %s33, 1
          %s467 = scalar_select %p466, %s33, 1
          %p468 = scmp.lt.s32.totalorder %s34, 0
          %s469 = scalar_select %p468, %s34, 0
          %s470 = smul.addr %s467, 4
          %s471 = sadd.s32 %s469, %s470
          %s472 = smul.addr %s471, 4
          %s473 = scalar_lea.vmem %s4, %s472
        $region64: #{tpu_custom_call.1} parent=55 // pred_fallthru
          _
        // Predicated region
        $region65: #{tpu_custom_call.1} parent=55 // pred_check
          %p474 = pneg %p191
        $region66: #{tpu_custom_call.1} parent=55 // pred_check_branch
          %476 = sbr.rel (%p474) target = $region68
        $region67: #{tpu_custom_call.1} parent=55 // pred_region
          %s477 = sand.u32 %s176, 1
          %s478 = scalar_lea.sflag [#allocation9], %s477
          %s479 = sand.u32 %s176, 1
          %s480 = smul.addr %s479, 4
          %s481 = scalar_lea.vmem [#allocation8], %s480
          %483 = dma.done %s478, 64
        $region68: #{tpu_custom_call.1} parent=55 // pred_fallthru
          _
      $region56: #{tpu_custom_call.1} parent=5 // pred_fallthru
        _
    $region6: #{tpu_custom_call.1} parent=1 // loop_footer
      %s26 = sadd.s32 1, %s22
    $region7: #{tpu_custom_call.1} parent=1 // loop_footer_branch
      %21 = sbr.rel target = $region3
    $region8: #{tpu_custom_call.1} parent=1 // loop_exit
      _
    %484 = vsyncpa [#allocation3], 1
    %s485 = scalar_lea.sflag [#allocation3], 1
    %486 = vsyncpa %s485, 1
    %487 = vsyncpa [#allocation6], 1
    %488 = vsyncpa [#allocation4], 1
    %s489 = scalar_lea.sflag [#allocation4], 1
    %490 = vsyncpa %s489, 1
    %491 = vsyncpa [#allocation9], 1
    %s492 = scalar_lea.sflag [#allocation9], 1
    %493 = vsyncpa %s492, 1

</llo_original>
